<compile_context>
chip_gen: v5e
topology: v5e:2x2
jax: 0.10.0
libtpu: 0.0.40
codegen_flags: <defaults>
</compile_context>

<pallas_src>
import jax
import jax.numpy as jnp
from jax.experimental import pallas as pl
from jax.experimental.pallas import tpu as pltpu

_LANE = 128
_SUBLANE = 8
_MAX_TN = 2048                        # lane tile when HW is tiled (multiple of 128)
_TARGET_TILE_BYTES = 4 * 1024 * 1024  # per-tile data budget (4 MiB sweet spot)
_VMEM_LIMIT_BYTES = 48 * 1024 * 1024  # < 64 MiB physical (v7x), << 128 MiB (v5e/v6e)


def _round_up(v, m):
    return (v + m - 1) // m * m


def _prelu_kernel(x_ref, a_ref, o_ref):
    # x_ref/o_ref: (tm, tn) data tile.  a_ref: (tm, 1) per-row alpha tile,
    # lane-broadcast by the VPU in the where/mul below.
    x = x_ref[...]
    a = a_ref[...]
    o_ref[...] = jnp.where(x > 0, x, a * x)


def nbn_prelu(x, alpha):
    """PReLU with per-channel weights (forward of nBNPReLU).

    x:     (N, C, H, W)
    alpha: (C,)
    """
    N, C, H, W = x.shape
    NC, HW = N * C, H * W

    x2 = x.reshape(NC, HW)
    # Per-row alpha: row n*C + c uses alpha[c].
    a2 = jnp.tile(alpha.astype(x.dtype), (N,)).reshape(NC, 1)

    bytes_per_elem = jnp.dtype(x.dtype).itemsize

    # Lane tile: full HW when small (block dim == full array dim is always
    # legal -> no padding, unmasked lane-dense stores for HW % 128 == 0), else
    # a 2048-lane multiple-of-128 tile; the ragged last tile is masked.
    tn = HW if HW <= _MAX_TN else _MAX_TN
    grid_n = pl.cdiv(HW, tn)

    # Row tile from the VMEM budget.  Account for lane padding to 128 in VMEM
    # so narrow-HW cases don't silently double their footprint.
    tn_vmem = _round_up(tn, _LANE)
    bytes_per_row = tn_vmem * bytes_per_elem
    rows_budget = max(
        _SUBLANE, (_TARGET_TILE_BYTES // bytes_per_row) // _SUBLANE * _SUBLANE
    )
    nc_ceil8 = _round_up(NC, _SUBLANE)
    tm = int(min(rows_budget, nc_ceil8))
    grid_m = pl.cdiv(NC, tm)

    # v7x megacore: keep at least 2 parallel grid steps when the shape allows,
    # so work can be sharded across both TensorCores.
    if grid_m * grid_n < 2 and NC > _SUBLANE:
        tm = _round_up(pl.cdiv(NC, 2), _SUBLANE)
        grid_m = pl.cdiv(NC, tm)

    out2 = pl.pallas_call(
        _prelu_kernel,
        out_shape=jax.ShapeDtypeStruct((NC, HW), x.dtype),
        grid_spec=pltpu.PrefetchScalarGridSpec(
            num_scalar_prefetch=0,
            grid=(grid_m, grid_n),
            in_specs=[
                pl.BlockSpec((tm, tn), lambda i, j: (i, j)),
                # Tiny per-step alpha block; its ~KiB DMA is fully hidden by
                # the double-buffered data pipeline.
                pl.BlockSpec((tm, 1), lambda i, j: (i, 0)),
            ],
            out_specs=pl.BlockSpec((tm, tn), lambda i, j: (i, j)),
        ),
        compiler_params=pltpu.CompilerParams(
            dimension_semantics=("parallel", "parallel"),
            vmem_limit_bytes=_VMEM_LIMIT_BYTES,
        ),
    )(x2, a2)

    return out2.reshape(N, C, H, W)


def nbn_prelu_ref(x, alpha):
    a = alpha.reshape(1, -1, 1, 1)
    return jnp.where(x > 0, x, a * x)


if __name__ == "__main__":
    key = jax.random.PRNGKey(0)
    kx, ka = jax.random.split(key)

    N, C, H, W = 2, 4, 16, 16
    x = jax.random.normal(kx, (N, C, H, W), dtype=jnp.float32)
    # PyTorch default init is 0.25 everywhere; use varied deterministic values
    # so the per-channel broadcast is actually exercised.
    alpha = 0.25 + 0.1 * jax.random.normal(ka, (C,), dtype=jnp.float32)

    out = jax.block_until_ready(nbn_prelu(x, alpha))

    ref = nbn_prelu_ref(x, alpha)
    assert out.shape == (N, C, H, W)
    assert jnp.allclose(out, ref, atol=1e-6, rtol=1e-6), "mismatch vs reference"

    print("KERNEL_OK")
</pallas_src>

<mosaic_0001>
module attributes {stable_mosaic.version = 11 : i64} {
  func.func @_prelu_kernel(%arg0: i32, %arg1: i32, %arg2: memref<8x256xf32, #tpu.memory_space<vmem>>, %arg3: memref<8x1xf32, #tpu.memory_space<vmem>>, %arg4: memref<8x256xf32, #tpu.memory_space<vmem>>) attributes {dimension_semantics = [#tpu.dimension_semantics<parallel>, #tpu.dimension_semantics<parallel>], iteration_bounds = array<i64: 1, 1>, scalar_prefetch = 0 : i64, scratch_operands = 0 : i64, tpu.core_type = #tpu.core_type<tc>, window_params = [{transform_indices = @transform_0, window_bounds = array<i64: 8, 256>}, {transform_indices = @transform_1, window_bounds = array<i64: 8, 1>}, {transform_indices = @transform_2, window_bounds = array<i64: 8, 256>}]} {
    %c0 = arith.constant 0 : index
    %c0_0 = arith.constant 0 : index
    %0 = vector.load %arg2[%c0, %c0_0] : memref<8x256xf32, #tpu.memory_space<vmem>>, vector<8x256xf32>
    %c0_1 = arith.constant 0 : index
    %c0_2 = arith.constant 0 : index
    %1 = vector.load %arg3[%c0_1, %c0_2] : memref<8x1xf32, #tpu.memory_space<vmem>>, vector<8x1xf32>
    %cst = arith.constant 0.000000e+00 : f32
    %2 = vector.broadcast %cst : f32 to vector<8x256xf32>
    %3 = arith.cmpf ogt, %0, %2 : vector<8x256xf32>
    %4 = vector.broadcast %1 : vector<8x1xf32> to vector<8x256xf32>
    %5 = arith.mulf %4, %0 : vector<8x256xf32>
    %6 = arith.select %3, %0, %5 : vector<8x256xi1>, vector<8x256xf32>
    %c0_3 = arith.constant 0 : index
    %c0_4 = arith.constant 0 : index
    %7 = vector.load %arg4[%c0_3, %c0_4] : memref<8x256xf32, #tpu.memory_space<vmem>>, vector<8x256xf32>
    tpu.vector_store %arg4[%c0_3, %c0_4], %6 {strides = array<i32>} : memref<8x256xf32, #tpu.memory_space<vmem>>, vector<8x256xf32>,
    return
  }
  func.func @transform_0(%arg0: i32, %arg1: i32) -> (i32, i32) {
    %c0_i32 = arith.constant 0 : i32
    return %arg0, %arg1 : i32, i32
  }
  func.func @transform_1(%arg0: i32, %arg1: i32) -> (i32, i32) {
    %c0_i32 = arith.constant 0 : i32
    %c0_i32_0 = arith.constant 0 : i32
    return %arg0, %c0_i32 : i32, i32
  }
  func.func @transform_2(%arg0: i32, %arg1: i32) -> (i32, i32) {
    %c0_i32 = arith.constant 0 : i32
    return %arg0, %arg1 : i32, i32
  }
}

</mosaic_0001>

<llo_original>
// kernel: tpu_custom_call.1
$region0: #{tpu_custom_call.1}
  #allocation0 [shape = 'u32[]', space=smem, size = 0x4, offset = 0x4, fixed_abs, tag = 'smem constant byte address 0x4 - core index']
  #allocation1 [shape = 'u32[72,128]{1,0:T(1,128)}', space=vmem, size = 0x9000, scoped, tag = 'internal scratch']
  %s0 = inlined_call_operand.hbm [shape: f32[8,256], index: 0, kind: input, shape index: {}]
  %s1 = inlined_call_operand.vmem [shape: f32[8,1], index: 1, kind: input, shape index: {}]
  %s2 = inlined_call_operand.hbm [shape: f32[8,256], index: 2, kind: output, shape index: {}]
  %s3 = sld [smem:[#allocation0]]
  $region22: #{tpu_custom_call.1} parent=0
    _
  %s5 = ssub.s32 1, %s3
  %s6 = scalar_select 0, %s5, %s3
  $region1: #{tpu_custom_call.1} parent=0
    #allocation2 [shape = 'u8[8192]{0}', space=vmem, size = 0x2000, scoped, tag = 'input window, operand 0, single buffered']
    #allocation3 [shape = 's32[1]{0}', space=sflag, size = 0x4, scoped, tag = 'scoped memory for tpu_custom_call.1']
    #allocation4 [shape = 's32[1]{0}', space=sflag, size = 0x4, scoped, tag = 'scoped memory for tpu_custom_call.1']
    #allocation5 [shape = 'u8[8192]{0}', space=vmem, size = 0x2000, scoped, tag = 'output window, operand 0, single buffered']
    %7 = vsyncpa [#allocation3], 0
    %8 = vsyncpa [#allocation4], 0
    // Predicated region
    $region2: #{tpu_custom_call.1} parent=1 // pred_check
      _
    $region3: #{tpu_custom_call.1} parent=1 // pred_check_branch
      %10 = sbr.rel (0) target = $region5
    $region4: #{tpu_custom_call.1} parent=1 // pred_region
      %12 = vsyncadd [#allocation3], 0
      %s14 = sshll.u32 %s0, 4
      %s15 = int_to_ptr.hbm [resolvable:$true] %s14
      %s16 = sshll.u32 [#allocation2], 4
      %s17 = int_to_ptr.vmem [resolvable:$true] %s16
      %19 = dma.hbm_to_vmem [thread:$0]  %s15, 256, %s17, [#allocation3]
    $region5: #{tpu_custom_call.1} parent=1 // pred_fallthru
      _
    // Predicated region
    $region6: #{tpu_custom_call.1} parent=1 // pred_check
      _
    $region7: #{tpu_custom_call.1} parent=1 // pred_check_branch
      %21 = sbr.rel (0) target = $region9
    $region8: #{tpu_custom_call.1} parent=1 // pred_region
      _
    $region9: #{tpu_custom_call.1} parent=1 // pred_fallthru
      _
    // Predicated region
    $region10: #{tpu_custom_call.1} parent=1 // pred_check
      _
    $region11: #{tpu_custom_call.1} parent=1 // pred_check_branch
      %23 = sbr.rel (0) target = $region13
    $region12: #{tpu_custom_call.1} parent=1 // pred_region
      %25 = dma.done [#allocation3], 256
    $region13: #{tpu_custom_call.1} parent=1 // pred_fallthru
      _
    %v26 = vld [vmem:[#allocation2] sm:$0xff]
    %v27 = vld [vmem:[#allocation2 + $0x8] sm:$0xff]
    %v28 = vld [vmem:[%s1] sm:$0xff]
    %vm29 = vcmp.gt.f32.partialorder %v26, 0.0
    %vm30 = vcmp.gt.f32.partialorder %v27, 0.0
    %32 = vset.pattern.permute.xlu0 0
    %33 = vperm.xlu0 %32, %v28
    %v34 = vpop.permute.xlu0 %33
    %v36 = vmul.f32 %v34, %v26
    %v37 = vmul.f32 %v34, %v27
    %v38 = vsel %vm29, %v26, %v36
    %v39 = vsel %vm30, %v27, %v37
    %40 = vst [vmem:[#allocation5] sm:$0xff] %v38
    %41 = vst [vmem:[#allocation5 + $0x8] sm:$0xff] %v39
    // Predicated region
    $region14: #{tpu_custom_call.1} parent=1 // pred_check
      _
    $region15: #{tpu_custom_call.1} parent=1 // pred_check_branch
      %43 = sbr.rel (0) target = $region17
    $region16: #{tpu_custom_call.1} parent=1 // pred_region
      %45 = vsyncadd [#allocation4], 0
      %s47 = sshll.u32 [#allocation5], 4
      %s48 = int_to_ptr.vmem [resolvable:$true] %s47
      %s49 = sshll.u32 %s2, 4
      %s50 = int_to_ptr.hbm [resolvable:$true] %s49
      %52 = dma.vmem_to_hbm [thread:$0]  %s48, 256, %s50, [#allocation4]
    $region17: #{tpu_custom_call.1} parent=1 // pred_fallthru
      _
    // Predicated region
    $region18: #{tpu_custom_call.1} parent=1 // pred_check
      _
    $region19: #{tpu_custom_call.1} parent=1 // pred_check_branch
      %54 = sbr.rel (0) target = $region21
    $region20: #{tpu_custom_call.1} parent=1 // pred_region
      %56 = dma.done [#allocation4], 256
    $region21: #{tpu_custom_call.1} parent=1 // pred_fallthru
      _
    %57 = vsyncpa [#allocation3], 1
    %58 = vsyncpa [#allocation4], 1

</llo_original>
